<compile_context>
chip_gen: v7x
topology: tpu7x:2x2x1
jax: 0.10.0
libtpu: 0.0.40
codegen_flags: <defaults>
</compile_context>

<pallas_src>
import math
from functools import partial

import jax
import jax.numpy as jnp
from jax.experimental import pallas as pl
from jax.experimental.pallas import tpu as pltpu


_VMEM_LIMIT = 48 * 1024 * 1024  # under v7x's 64 MiB physical VMEM; fine on v5e/v6e


# ------------------------------ small helpers ------------------------------- #

def _round_up(x, m):
    return ((x + m - 1) // m) * m


def _lane_tile(n, candidates=(2048, 1024, 512, 256, 128)):
    """Largest lane-aligned tile dividing n, else the full extent (always legal)."""
    for t in candidates:
        if n >= t and n % t == 0:
            return t
    return n


# ------------------------ tiled matmul + bias kernels ------------------------ #

def _matmul_bias_single_k_kernel(x_ref, w_ref, b_ref, o_ref):
    # Whole contraction in one dot: no accumulator scratch, no init/finalize,
    # bias added in the epilogue.  bf16 MXU inputs, f32 accumulation.
    o_ref[...] = (
        jnp.dot(x_ref[...], w_ref[...], preferred_element_type=jnp.float32)
        + b_ref[...]
    ).astype(o_ref.dtype)


def _matmul_bias_multi_k_kernel(x_ref, w_ref, b_ref, o_ref):
    # K-tiled fallback: accumulate directly into the f32 output block, which is
    # resident across the innermost ("arbitrary") K axis — no VMEM scratch.
    @pl.when(pl.program_id(2) == 0)
    def _():
        o_ref[...] = jnp.broadcast_to(b_ref[...], o_ref.shape)

    o_ref[...] += jnp.dot(x_ref[...], w_ref[...], preferred_element_type=jnp.float32)


def matmul_bias(x, w, b, *, out_dtype=jnp.float32,
                tm_target=1024, tn_target=512, max_single_k=2048, tk_target=512):
    """y = x @ w + b.  x: (M, K), w: (K, N), b: (N,) -> (M, N) in `out_dtype`.

    Small dims use full-extent blocks (no padding); K is only padded when it
    exceeds the single-tile threshold and is ragged.
    """
    M, K = x.shape
    K2, N = w.shape
    assert K == K2

    xb = x.astype(jnp.bfloat16)          # no-op when the caller already passes bf16
    wb = w.astype(jnp.bfloat16)
    b2 = b.astype(jnp.float32).reshape(1, N)

    tm = M if M <= tm_target else tm_target   # tm_target multiple of 16 (bf16 sublanes)
    tn = N if N <= tn_target else tn_target   # tn_target multiple of 128
    single_k = K <= max_single_k
    tk = K if single_k else tk_target
    Mp, Np = _round_up(M, tm), _round_up(N, tn)
    Kp = K if single_k else _round_up(K, tk)

    if Mp != M or Kp != K:
        xb = jnp.pad(xb, ((0, Mp - M), (0, Kp - K)))
    if Kp != K or Np != N:
        wb = jnp.pad(wb, ((0, Kp - K), (0, Np - N)))
    if Np != N:
        b2 = jnp.pad(b2, ((0, 0), (0, Np - N)))

    cost = pl.CostEstimate(
        flops=2 * Mp * Np * Kp,
        transcendentals=0,
        bytes_accessed=Mp * Kp * 2 + Kp * Np * 2 + Np * 4 + Mp * Np * 4,
    )

    if single_k:
        out = pl.pallas_call(
            _matmul_bias_single_k_kernel,
            out_shape=jax.ShapeDtypeStruct((Mp, Np), out_dtype),
            grid_spec=pltpu.PrefetchScalarGridSpec(
                num_scalar_prefetch=0,
                grid=(Mp // tm, Np // tn),
                in_specs=[
                    pl.BlockSpec((tm, tk), lambda i, j: (i, 0)),
                    pl.BlockSpec((tk, tn), lambda i, j: (0, j)),
                    pl.BlockSpec((1, tn), lambda i, j: (0, j)),
                ],
                out_specs=pl.BlockSpec((tm, tn), lambda i, j: (i, j)),
            ),
            compiler_params=pltpu.CompilerParams(
                dimension_semantics=("parallel", "parallel"),
                vmem_limit_bytes=_VMEM_LIMIT),
            cost_estimate=cost,
        )(xb, wb, b2)
    else:
        out = pl.pallas_call(
            _matmul_bias_multi_k_kernel,
            out_shape=jax.ShapeDtypeStruct((Mp, Np), jnp.float32),
            grid_spec=pltpu.PrefetchScalarGridSpec(
                num_scalar_prefetch=0,
                grid=(Mp // tm, Np // tn, Kp // tk),
                in_specs=[
                    pl.BlockSpec((tm, tk), lambda i, j, k: (i, k)),
                    pl.BlockSpec((tk, tn), lambda i, j, k: (k, j)),
                    pl.BlockSpec((1, tn), lambda i, j, k: (0, j)),
                ],
                out_specs=pl.BlockSpec((tm, tn), lambda i, j, k: (i, j)),
            ),
            compiler_params=pltpu.CompilerParams(
                dimension_semantics=("parallel", "parallel", "arbitrary"),
                vmem_limit_bytes=_VMEM_LIMIT),
            cost_estimate=cost,
        )(xb, wb, b2)
        if out_dtype != jnp.float32:
            out = out.astype(out_dtype)

    if (Mp, Np) != (M, N):
        out = out[:M, :N]
    return out


# --------------------- fused neck 1x1 projection kernel ---------------------- #

def _neck_proj_kernel(x_ref, wt_ref, b_ref, o_ref):
    # x_ref:  (1, tn, C)      bf16 token-major features
    # wt_ref: (d_model, C)    bf16 (resident across the grid)
    # b_ref:  (d_model, 1)    f32
    # o_ref:  (1, d_model, tn) f32 — N stays the last (lane) dim: dense stores.
    # Contract the channel (last) dims of both operands; the per-tile transpose
    # this implies rides the XLU alongside the MXU (no HBM permute needed).
    y = jax.lax.dot_general(
        wt_ref[...], x_ref[0],
        dimension_numbers=(((1,), (1,)), ((), ())),
        preferred_element_type=jnp.float32)
    o_ref[0] = y + b_ref[...]


def neck_project(x_bnc, wt_bf16, b_col):
    """1x1-conv projection fused with the layout change: (B, N, C) -> (B, d_model, N)."""
    B, N, C = x_bnc.shape
    d_model = wt_bf16.shape[0]
    tn = _lane_tile(N)
    # v7x has 2 TensorCores: keep >= 2 steps on the parallel grid when possible.
    while B * (N // tn) < 2 and tn > 128 and N % (tn // 2) == 0:
        tn //= 2
    grid = (B, N // tn)
    cost = pl.CostEstimate(
        flops=2 * B * d_model * C * N,
        transcendentals=0,
        bytes_accessed=B * N * C * 2 + d_model * C * 2 + d_model * 4 + B * d_model * N * 4,
    )
    return pl.pallas_call(
        _neck_proj_kernel,
        out_shape=jax.ShapeDtypeStruct((B, d_model, N), jnp.float32),
        grid_spec=pltpu.PrefetchScalarGridSpec(
            num_scalar_prefetch=0,
            grid=grid,
            in_specs=[
                pl.BlockSpec((1, tn, C), lambda b, j: (b, j, 0)),
                pl.BlockSpec((d_model, C), lambda b, j: (0, 0)),
                pl.BlockSpec((d_model, 1), lambda b, j: (0, 0)),
            ],
            out_specs=pl.BlockSpec((1, d_model, tn), lambda b, j: (b, 0, j)),
        ),
        compiler_params=pltpu.CompilerParams(
            dimension_semantics=("parallel", "parallel"),
            vmem_limit_bytes=_VMEM_LIMIT),
        cost_estimate=cost,
    )(x_bnc.astype(jnp.bfloat16), wt_bf16, b_col)


# ----------------------- sine positional-encoding kernel --------------------- #

def _sine_pos_kernel(o_ref, *, temperature):
    # o_ref: (d_model, tn) tile of the interleaved encoding:
    #   row 2k   -> sin(pos * T^(-2k/d_model))
    #   row 2k+1 -> cos(pos * T^(-2k/d_model))
    # Interleaving is done in-register via a row-parity select, so the kernel
    # writes the final (d_model, N) layout directly (no wrapper stack/reshape).
    d_model, tn = o_ref.shape
    j0 = pl.program_id(0) * tn
    row = jax.lax.broadcasted_iota(jnp.int32, (d_model, tn), 0)
    pos = (jax.lax.broadcasted_iota(jnp.int32, (d_model, tn), 1) + j0).astype(jnp.float32)
    pair = (row // 2).astype(jnp.float32)
    inv_freq = jnp.exp(-(2.0 * pair / float(d_model)) * math.log(temperature))
    angle = pos * inv_freq
    o_ref[...] = jnp.where(row % 2 == 0, jnp.sin(angle), jnp.cos(angle))


def sine_pos_embedding(num_pos, d_model, temperature=10000.0):
    # TODO(synk): SAM2's real PositionEmbeddingSine is 2D (separate y/x freqs,
    # normalize + 2*pi scale); this synthetic neck uses a 1D sine over the
    # flattened token index, matching the previous reference implementation.
    assert d_model % 2 == 0
    tn = _lane_tile(num_pos)           # lane tiles so a block never blows scoped VMEM
    grid = (num_pos // tn,)
    return pl.pallas_call(
        partial(_sine_pos_kernel, temperature=temperature),
        out_shape=jax.ShapeDtypeStruct((d_model, num_pos), jnp.float32),
        grid=grid,
        out_specs=pl.BlockSpec((d_model, tn), lambda j: (0, j)),
        compiler_params=pltpu.CompilerParams(
            dimension_semantics=("parallel",),
            vmem_limit_bytes=_VMEM_LIMIT),
    )()


# --------------------------- conv-as-matmul helpers -------------------------- #

def patch_embed(x_nchw, w, b, patch, *, out_dtype=jnp.bfloat16):
    """Stride=kernel=patch Conv2d via im2col + Pallas matmul -> (B, N, C_out)."""
    B, C, H, W = x_nchw.shape
    ph, pw = H // patch, W // patch
    # Cast to bf16 *before* the layout pass so the im2col transpose moves half the bytes.
    x = x_nchw.astype(jnp.bfloat16)
    # TODO(synk): fuse this im2col into the matmul grid (read NCHW tiles via the
    # BlockSpec and do the (c,kh,kw) gather in VMEM) to remove this
    # HBM-materialized transpose at full SAM2 resolutions.
    cols = x.reshape(B, C, ph, patch, pw, patch)
    cols = cols.transpose(0, 2, 4, 1, 3, 5)            # (B, ph, pw, C, kh, kw)
    cols = cols.reshape(B * ph * pw, C * patch * patch)
    y = matmul_bias(cols, w, b, out_dtype=out_dtype)
    return y.reshape(B, ph * pw, -1)


def patch_merge(tokens, w, b, hw, *, out_dtype=jnp.bfloat16):
    """2x2 spatial merge + linear projection (stride-2 conv). tokens: (B, hw*hw, C)."""
    B, N, C = tokens.shape
    x = tokens.astype(jnp.bfloat16)    # no-op: the trunk already emits bf16
    # TODO(synk): fold this 2x2 gather into the matmul BlockSpec as well.
    x = x.reshape(B, hw // 2, 2, hw // 2, 2, C).transpose(0, 1, 3, 2, 4, 5)
    x = x.reshape(B * (hw // 2) * (hw // 2), 4 * C)
    y = matmul_bias(x, w, b, out_dtype=out_dtype)
    return y.reshape(B, (hw // 2) * (hw // 2), -1)


# ------------------------------- Trunk / Neck -------------------------------- #

class Trunk:
    """Tiny synthetic multi-scale trunk: patch-embed stage + 2x2 merge stage."""

    def __init__(self, key, in_chans=3, embed_dims=(32, 64), patch=4):
        self.embed_dims = list(embed_dims)
        self.patch = patch
        k0, k1, k2, k3 = jax.random.split(key, 4)
        K0 = in_chans * patch * patch
        # Weights pre-cast to bf16 (MXU inputs); biases stay f32.
        self.w0 = (jax.random.normal(k0, (K0, embed_dims[0]), jnp.float32)
                   / math.sqrt(K0)).astype(jnp.bfloat16)
        self.b0 = jax.random.normal(k1, (embed_dims[0],), jnp.float32) * 0.01
        K1 = 4 * embed_dims[0]
        self.w1 = (jax.random.normal(k2, (K1, embed_dims[1]), jnp.float32)
                   / math.sqrt(K1)).astype(jnp.bfloat16)
        self.b1 = jax.random.normal(k3, (embed_dims[1],), jnp.float32) * 0.01

    def __call__(self, x_nchw):
        B, C, H, W = x_nchw.shape
        # Intermediates stay bf16: the next stage consumes bf16 anyway, so no
        # f32 writeback + re-cast pass between stages.
        x0 = patch_embed(x_nchw, self.w0, self.b0, self.patch)     # (B, N0, C0) bf16
        hw0 = H // self.patch
        x1 = patch_merge(x0, self.w1, self.b1, hw0)                # (B, N1, C1) bf16
        return [x0, x1]


class Neck:
    """FPN-style neck: per-level 1x1-conv projection to d_model + sine pos enc."""

    def __init__(self, key, backbone_channel_list, d_model=32):
        self.backbone_channel_list = list(backbone_channel_list)
        self.d_model = d_model
        keys = jax.random.split(key, 2 * len(backbone_channel_list))
        self.wts, self.bs = [], []
        for i, c in enumerate(backbone_channel_list):
            w = jax.random.normal(keys[2 * i], (c, d_model), jnp.float32) / math.sqrt(c)
            b = jax.random.normal(keys[2 * i + 1], (d_model,), jnp.float32) * 0.01
            # Store the 1x1-conv weight as (d_model, C) in bf16 so the projection
            # kernel contracts C directly and emits (B, d_model, N) (lane-dense N).
            self.wts.append(jnp.transpose(w).astype(jnp.bfloat16))
            self.bs.append(b.reshape(d_model, 1).astype(jnp.float32))
        # Positional encodings depend only on (B, N): compute once and cache.
        self._pos_cache = {}

    def _pos(self, B, N):
        key = (B, N)
        if key not in self._pos_cache:
            p = sine_pos_embedding(N, self.d_model)                 # (d_model, N)
            self._pos_cache[key] = jnp.broadcast_to(p[None], (B, self.d_model, N))
        return self._pos_cache[key]

    def __call__(self, xs):
        # xs[i]: (B, N_i, C_i) token-major trunk features.  The spec's
        # permute(0,2,1).unsqueeze(1) adjustment is folded into the projection
        # kernel (channel contraction on the last dim, channel-major output).
        features, pos = [], []
        for x, wt, b in zip(xs, self.wts, self.bs):
            B, N, C = x.shape
            features.append(neck_project(x, wt, b))                # (B, d_model, N) f32
            pos.append(self._pos(B, N))
        return features, pos


# -------------------------------- ImageEncoder ------------------------------- #

class ImageEncoder:
    def __init__(self, trunk, neck, scalp=0):
        self.trunk = trunk
        self.neck = neck
        self.scalp = scalp
        assert self.trunk.embed_dims == self.neck.backbone_channel_list, (
            "Channel dims of trunk and neck do not match."
        )

    def __call__(self, sample):
        xs = self.trunk(sample)
        # TODO(synk): original forward has debug print() calls; omitted here.
        # The x.permute(0, 2, 1).unsqueeze(1) adjustment is not materialized in
        # HBM: the neck projection kernel consumes the token-major (B, N, C)
        # features directly and emits the channel-major (B, d_model, N) result
        # that the adjusted path produces (per perf review: removes one full
        # HBM read+write per level).
        features, pos = self.neck(xs)
        if self.scalp > 0:
            features, pos = features[:-self.scalp], pos[:-self.scalp]
        src = features[-1]
        return {
            "vision_features": src,
            "vision_pos_enc": pos,
            "backbone_fpn": features,
        }


# ------------------------------------ main ----------------------------------- #

if __name__ == "__main__":
    key = jax.random.PRNGKey(0)
    k_img, k_trunk, k_neck = jax.random.split(key, 3)

    # Small input consistent with the module's NCHW image input.
    sample = jax.random.normal(k_img, (2, 3, 16, 16), jnp.float32)

    trunk = Trunk(k_trunk, in_chans=3, embed_dims=(32, 64), patch=4)
    neck = Neck(k_neck, trunk.embed_dims, d_model=32)
    encoder = ImageEncoder(trunk, neck, scalp=0)

    out = encoder(sample)
    out = jax.block_until_ready(out)

    # Shape / dtype sanity checks.
    assert out["backbone_fpn"][0].shape == (2, 32, 16)   # level 0: N0 = (16/4)^2 = 16
    assert out["backbone_fpn"][1].shape == (2, 32, 4)    # level 1: N1 = 4
    assert out["vision_features"].shape == (2, 32, 4)
    assert out["vision_pos_enc"][0].shape == (2, 32, 16)
    assert all(f.dtype == jnp.float32 for f in out["backbone_fpn"])

    # Pure-JAX reference (same bf16-held weights, f32 math) for a tolerance check.
    def ref_forward(img):
        B, C, H, W = img.shape
        p = trunk.patch
        ph, pw = H // p, W // p
        cols = img.reshape(B, C, ph, p, pw, p).transpose(0, 2, 4, 1, 3, 5)
        cols = cols.reshape(B, ph * pw, C * p * p)
        x0 = cols @ trunk.w0.astype(jnp.float32) + trunk.b0
        hw0 = ph
        m = x0.reshape(B, hw0 // 2, 2, hw0 // 2, 2, -1).transpose(0, 1, 3, 2, 4, 5)
        m = m.reshape(B, (hw0 // 2) * (hw0 // 2), -1)
        x1 = m @ trunk.w1.astype(jnp.float32) + trunk.b1
        feats = []
        for x, wt, bb in zip([x0, x1], neck.wts, neck.bs):
            feats.append(jnp.einsum("bnc,dc->bdn", x, wt.astype(jnp.float32)) + bb[None])
        return feats

    def ref_pos(N, d):
        k = jnp.arange(d // 2, dtype=jnp.float32)
        inv = jnp.exp(-(2.0 * k / d) * math.log(10000.0))
        pos = jnp.arange(N, dtype=jnp.float32)
        ang = inv[:, None] * pos[None, :]
        return jnp.stack([jnp.sin(ang), jnp.cos(ang)], axis=1).reshape(d, N)

    ref_feats = ref_forward(sample)
    for got, want in zip(out["backbone_fpn"], ref_feats):
        assert jnp.allclose(got, want, rtol=5e-2, atol=5e-2), "feature mismatch"
    assert jnp.allclose(out["vision_pos_enc"][0][0], ref_pos(16, 32),
                        rtol=1e-4, atol=1e-4), "pos-enc mismatch"

    print("KERNEL_OK")
</pallas_src>

<mosaic_0001>
module attributes {stable_mosaic.version = 11 : i64} {
  func.func @_matmul_bias_single_k_kernel(%arg0: i32, %arg1: i32, %arg2: memref<32x48xbf16, #tpu.memory_space<vmem>>, %arg3: memref<48x32xbf16, #tpu.memory_space<vmem>>, %arg4: memref<1x32xf32, #tpu.memory_space<vmem>>, %arg5: memref<32x32xbf16, #tpu.memory_space<vmem>>) attributes {dimension_semantics = [#tpu.dimension_semantics<parallel>, #tpu.dimension_semantics<parallel>], iteration_bounds = array<i64: 1, 1>, scalar_prefetch = 0 : i64, scratch_operands = 0 : i64, tpu.core_type = #tpu.core_type<tc>, window_params = [{transform_indices = @transform_0, window_bounds = array<i64: 32, 48>}, {transform_indices = @transform_1, window_bounds = array<i64: 48, 32>}, {transform_indices = @transform_2, window_bounds = array<i64: 1, 32>}, {transform_indices = @transform_3, window_bounds = array<i64: 32, 32>}]} {
    %c0 = arith.constant 0 : index
    %c0_0 = arith.constant 0 : index
    %0 = vector.load %arg2[%c0, %c0_0] : memref<32x48xbf16, #tpu.memory_space<vmem>>, vector<32x48xbf16>
    %c0_1 = arith.constant 0 : index
    %c0_2 = arith.constant 0 : index
    %1 = vector.load %arg3[%c0_1, %c0_2] : memref<48x32xbf16, #tpu.memory_space<vmem>>, vector<48x32xbf16>
    %cst = arith.constant dense<0.000000e+00> : vector<32x32xf32>
    %2 = tpu.matmul %0, %1, %cst {dimension_numbers = #tpu.dot_dimension_numbers<[1], [0], [0], [1], [0, 0, 1, 1], [], []>} : vector<32x48xbf16>, vector<48x32xbf16>, vector<32x32xf32> -> vector<32x32xf32>
    %c0_3 = arith.constant 0 : index
    %c0_4 = arith.constant 0 : index
    %3 = vector.load %arg4[%c0_3, %c0_4] : memref<1x32xf32, #tpu.memory_space<vmem>>, vector<1x32xf32>
    %4 = vector.broadcast %3 : vector<1x32xf32> to vector<32x32xf32>
    %5 = arith.addf %2, %4 : vector<32x32xf32>
    %6 = arith.truncf %5 : vector<32x32xf32> to vector<32x32xbf16>
    %c0_5 = arith.constant 0 : index
    %c0_6 = arith.constant 0 : index
    %7 = vector.load %arg5[%c0_5, %c0_6] : memref<32x32xbf16, #tpu.memory_space<vmem>>, vector<32x32xbf16>
    tpu.vector_store %arg5[%c0_5, %c0_6], %6 {strides = array<i32>} : memref<32x32xbf16, #tpu.memory_space<vmem>>, vector<32x32xbf16>,
    return
  }
  func.func @transform_0(%arg0: i32, %arg1: i32) -> (i32, i32) {
    %c0_i32 = arith.constant 0 : i32
    %c0_i32_0 = arith.constant 0 : i32
    return %arg0, %c0_i32 : i32, i32
  }
  func.func @transform_1(%arg0: i32, %arg1: i32) -> (i32, i32) {
    %c0_i32 = arith.constant 0 : i32
    %c0_i32_0 = arith.constant 0 : i32
    return %c0_i32, %arg1 : i32, i32
  }
  func.func @transform_2(%arg0: i32, %arg1: i32) -> (i32, i32) {
    %c0_i32 = arith.constant 0 : i32
    %c0_i32_0 = arith.constant 0 : i32
    return %c0_i32, %arg1 : i32, i32
  }
  func.func @transform_3(%arg0: i32, %arg1: i32) -> (i32, i32) {
    %c0_i32 = arith.constant 0 : i32
    return %arg0, %arg1 : i32, i32
  }
}

</mosaic_0001>

<llo_original>
// kernel: tpu_custom_call.1
$region0: #{tpu_custom_call.1}
  #allocation0 [shape = 'u32[]', space=smem, size = 0x4, offset = 0x4, fixed_abs, tag = 'smem constant byte address 0x4 - core index']
  #allocation1 [shape = 'u32[144,128]{1,0:T(1,128)}', space=vmem, size = 0x12000, scoped, tag = 'internal scratch']
  %s0 = inlined_call_operand.vmem [shape: bf16[32,48], index: 0, kind: input, shape index: {}]
  %s1 = inlined_call_operand.vmem [shape: bf16[48,32], index: 1, kind: input, shape index: {}]
  %s2 = inlined_call_operand.vmem [shape: f32[1,32], index: 2, kind: input, shape index: {}]
  %s3 = inlined_call_operand.hbm [shape: bf16[32,32], index: 3, kind: output, shape index: {}]
  %s4 = sld [smem:[#allocation0]]
  $region22: #{tpu_custom_call.1} parent=0
    _
  %s6 = ssub.s32 1, %s4
  %s7 = scalar_select 0, %s6, %s4
  $region1: #{tpu_custom_call.1} parent=0
    #allocation2 [shape = 'u8[8192]{0}', space=vmem, size = 0x2000, scoped, tag = 'output window, operand 0, single buffered']
    #allocation3 [shape = 's32[1]{0}', space=sflag, size = 0x4, scoped, tag = 'scoped memory for tpu_custom_call.1']
    %8 = vsyncpa [#allocation3], 0
    // Predicated region
    $region2: #{tpu_custom_call.1} parent=1 // pred_check
      _
    $region3: #{tpu_custom_call.1} parent=1 // pred_check_branch
      %10 = sbr.rel (0) target = $region5
    $region4: #{tpu_custom_call.1} parent=1 // pred_region
      _
    $region5: #{tpu_custom_call.1} parent=1 // pred_fallthru
      _
    // Predicated region
    $region6: #{tpu_custom_call.1} parent=1 // pred_check
      _
    $region7: #{tpu_custom_call.1} parent=1 // pred_check_branch
      %12 = sbr.rel (0) target = $region9
    $region8: #{tpu_custom_call.1} parent=1 // pred_region
      _
    $region9: #{tpu_custom_call.1} parent=1 // pred_fallthru
      _
    // Predicated region
    $region10: #{tpu_custom_call.1} parent=1 // pred_check
      _
    $region11: #{tpu_custom_call.1} parent=1 // pred_check_branch
      %14 = sbr.rel (0) target = $region13
    $region12: #{tpu_custom_call.1} parent=1 // pred_region
      _
    $region13: #{tpu_custom_call.1} parent=1 // pred_fallthru
      _
    %v16 = vld [vmem:[%s0] sm:$0xf]
    %v17 = vld [vmem:[%s0 + $0x4] sm:$0xf]
    %v18 = vld [vmem:[%s0 + $0x8] sm:$0xf]
    %v19 = vld [vmem:[%s0 + $0xc] sm:$0xf]
    %v20 = vld [vmem:[%s1] sm:$0xf]
    %v21 = vld [vmem:[%s1 + $0x4] sm:$0xf]
    %v22 = vld [vmem:[%s1 + $0x8] sm:$0xf]
    %v23 = vld [vmem:[%s1 + $0xc] sm:$0xf]
    %v24 = vld [vmem:[%s1 + $0x10] sm:$0xf]
    %v25 = vld [vmem:[%s1 + $0x14] sm:$0xf]
    %v26 = vld [vmem:[%s2] sm:$0x1]
    %v28 = vlaneseq
    %v29 = vshrl.u32 %v28, 7
    %v30 = vsub.s32 0, %v29
    %v31 = vrot.slane %v26, %v30
    %v37 = vunpack.c.l.b16 %v16
    %v38 = vunpack.c.l.b16 %v17
    %v39 = vunpack.c.l.b16 %v18
    %v40 = vunpack.c.l.b16 %v19
    %v41 = vpack.c.b16 %v38, %v37
    %v42 = vpack.c.b16 %v40, %v39
    %v49 = vunpack.c.l.b16 %v20
    %v50 = vunpack.c.l.b16 %v21
    %v51 = vunpack.c.l.b16 %v22
    %v52 = vunpack.c.l.b16 %v23
    %v53 = vunpack.c.l.b16 %v24
    %v54 = vunpack.c.l.b16 %v25
    %v55 = vpack.c.b16 %v50, %v49
    %v56 = vpack.c.b16 %v52, %v51
    %v57 = vpack.c.b16 %v54, %v53
    %vm61 = vcmask 392192
    %v63 = vsel %vm61, %v41, 0
    %v66 = vsel %vm61, %v42, 0
    %68 = vmatprep.subr.bf16.mxu0 0
    %69 = vmatpush1.bf16.msra.mxu0 %v55
    %70 = vmatprep.subr.bf16.mxu0 0
    %71 = vmatpush1.bf16.msra.mxu0 %v56
    %72 = vmatprep.subr.bf16.mxu0 0
    %73 = vmatpush1.bf16.msra.mxu0 %v57
    %74 = vmatprep.subr.bf16.mxu0 0
    %75 = vmatpush1.bf16.msra.mxu0 0
    %76 = vmatprep.subr.bf16.mxu0 0
    %77 = vmatpush1.bf16.msra.mxu0 0
    %78 = vmatprep.subr.bf16.mxu0 0
    %79 = vmatpush1.bf16.msra.mxu0 0
    %80 = vmatprep.subr.bf16.mxu0 0
    %81 = vmatpush1.bf16.msra.mxu0 0
    %82 = vmatprep.subr.bf16.mxu0 0
    %83 = vmatpush1.bf16.msra.mxu0 0
    %84 = vmatprep.subr.bf16.mxu0 0
    %85 = vmatpush1.bf16.msra.mxu0 0
    %86 = vmatprep.subr.bf16.mxu0 0
    %87 = vmatpush1.bf16.msra.mxu0 0
    %88 = vmatprep.subr.bf16.mxu0 0
    %89 = vmatpush1.bf16.msra.mxu0 0
    %90 = vmatprep.subr.bf16.mxu0 0
    %91 = vmatpush1.bf16.msra.mxu0 0
    %92 = vmatprep.subr.bf16.mxu0 0
    %93 = vmatpush1.bf16.msra.mxu0 0
    %94 = vmatprep.subr.bf16.mxu0 0
    %95 = vmatpush1.bf16.msra.mxu0 0
    %96 = vmatprep.subr.bf16.mxu0 0
    %97 = vmatpush1.bf16.msra.mxu0 0
    %98 = vmatprep.subr.bf16.mxu0 0
    %99 = vmatpush1.bf16.msra.mxu0 0
    %100 = vmatprep.mubr.bf16.mxu0 0
    %101 = vmatmul.mubr.bf16.gmra.mrb[0].mxu0 %v63
    %v102 = vpop.f32.mrb[0].mxu0
    %v103 = vadd.f32 %v31, %v102
    %v104 = vpop.f32.mrb[0].mxu0
    %v105 = vpop.f32.mrb[0].mxu0
    %v106 = vadd.f32 %v31, %v105
    %v107 = vpop.f32.mrb[0].mxu0
    %108 = vmatprep.mubr.bf16.mxu0 0
    %109 = vmatmul.mubr.bf16.gmra.mrb[0].mxu0 %v66
    %v110 = vpop.f32.mrb[0].mxu0
    %v111 = vadd.f32 %v31, %v110
    %v112 = vpop.f32.mrb[0].mxu0
    %v113 = vpop.f32.mrb[0].mxu0
    %v114 = vadd.f32 %v31, %v113
    %v115 = vpop.f32.mrb[0].mxu0
    %116 = vdwg.mxu0
    %v117 = vpack.c.bf16 %v106, %v103
    %v118 = vpack.c.bf16 %v114, %v111
    %v121 = vunpack.c.l.b16 %v117
    %v122 = vunpack.c.h.b16 %v117
    %v123 = vunpack.c.l.b16 %v118
    %v124 = vunpack.c.h.b16 %v118
    %v125 = vpack.c.b16 %v121, %v121
    %v126 = vpack.c.b16 %v122, %v122
    %v127 = vpack.c.b16 %v123, %v123
    %v128 = vpack.c.b16 %v124, %v124
    %vm133 = vcmask 257024
    %134 = vst.msk [vmem:[#allocation2] sm:$0xf] %vm133, %v125
    %135 = vst.msk [vmem:[#allocation2 + $0x4] sm:$0xf] %vm133, %v126
    %136 = vst.msk [vmem:[#allocation2 + $0x8] sm:$0xf] %vm133, %v127
    %137 = vst.msk [vmem:[#allocation2 + $0xc] sm:$0xf] %vm133, %v128
    // Predicated region
    $region14: #{tpu_custom_call.1} parent=1 // pred_check
      _
    $region15: #{tpu_custom_call.1} parent=1 // pred_check_branch
      %139 = sbr.rel (0) target = $region17
    $region16: #{tpu_custom_call.1} parent=1 // pred_region
      %s141 = ssub.s32 256, 256
      %142 = vsyncadd [#allocation3], %s141
      %s143 = sshll.u32 [#allocation2], 4
      %s144 = int_to_ptr.vmem [resolvable:$true] %s143
      %149 = dma.vmem_to_hbm [thread:$0]  %s144, 256, %s3, [#allocation3], 64, 64, 4
    $region17: #{tpu_custom_call.1} parent=1 // pred_fallthru
      _
    // Predicated region
    $region18: #{tpu_custom_call.1} parent=1 // pred_check
      _
    $region19: #{tpu_custom_call.1} parent=1 // pred_check_branch
      %151 = sbr.rel (0) target = $region21
    $region20: #{tpu_custom_call.1} parent=1 // pred_region
      %152 = dma.done [#allocation3], 256
    $region21: #{tpu_custom_call.1} parent=1 // pred_fallthru
      _
    %153 = vsyncpa [#allocation3], 1

</llo_original>
